<compile_context>
chip_gen: v5e
topology: v5e:2x2
jax: 0.10.0
libtpu: 0.0.40
codegen_flags: <defaults>
</compile_context>

<pallas_src>
import functools

import jax
import jax.numpy as jnp
from jax.experimental import pallas as pl
from jax.experimental.pallas import tpu as pltpu


def _round_up(x, m):
    return ((x + m - 1) // m) * m


def _vmem_budget_bytes():
    """Usable VMEM budget: ~0.8x physical capacity (generation-aware)."""
    try:
        cap = int(pltpu.get_tpu_info().vmem_capacity_bytes)
    except Exception:  # query unavailable -> conservative (fits every chip)
        cap = 64 << 20
    return int(cap * 0.8)


# --------------------------------------------------------------------------- #
# Kernels
# --------------------------------------------------------------------------- #
def _ffn_resident_kernel(x_ref, w1_ref, b1_ref, w2_ref, b2_ref, o_ref):
    # Weights are VMEM-resident (constant index_map), grid = (row tiles,).
    h = jnp.dot(x_ref[...], w1_ref[...], preferred_element_type=jnp.float32)
    h = jnp.maximum(h + b1_ref[...], 0.0)
    # dropout == identity at inference time (see TODO in header).
    out = jnp.dot(h.astype(w2_ref.dtype), w2_ref[...],
                  preferred_element_type=jnp.float32)
    o_ref[...] = (out + b2_ref[...]).astype(o_ref.dtype)


def _ffn_stream_kernel_f32out(x_ref, w1_ref, b1_ref, w2_ref, b2_ref, o_ref):
    # f32 output: accumulate directly into the (resident) output block, no scratch.
    k = pl.program_id(1)
    h = jnp.dot(x_ref[...], w1_ref[...], preferred_element_type=jnp.float32)
    h = jnp.maximum(h + b1_ref[...], 0.0)
    contrib = jnp.dot(h.astype(w2_ref.dtype), w2_ref[...],
                      preferred_element_type=jnp.float32)

    @pl.when(k == 0)
    def _():
        o_ref[...] = contrib + b2_ref[...]

    @pl.when(k > 0)
    def _():
        o_ref[...] += contrib


def _ffn_stream_kernel_acc(x_ref, w1_ref, b1_ref, w2_ref, b2_ref, o_ref, acc_ref):
    # Non-f32 output: keep an f32 VMEM accumulator across the d_ff grid axis.
    k = pl.program_id(1)

    @pl.when(k == 0)
    def _():
        acc_ref[...] = jnp.zeros_like(acc_ref)

    h = jnp.dot(x_ref[...], w1_ref[...], preferred_element_type=jnp.float32)
    h = jnp.maximum(h + b1_ref[...], 0.0)
    acc_ref[...] += jnp.dot(h.astype(w2_ref.dtype), w2_ref[...],
                            preferred_element_type=jnp.float32)

    @pl.when(k == pl.num_programs(1) - 1)
    def _():
        o_ref[...] = (acc_ref[...] + b2_ref[...]).astype(o_ref.dtype)


# --------------------------------------------------------------------------- #
# pallas_call wrapper (static config decided in Python, weights pre-padded)
# --------------------------------------------------------------------------- #
@functools.partial(
    jax.jit,
    static_argnames=("tm", "tf", "m_pad", "dim", "dim_p", "dff_pad",
                     "resident", "compute_dtype", "vmem_limit"))
def _ffn_padded_call(x2d, w1p, b1p, w2p, b2p, *, tm, tf, m_pad, dim, dim_p,
                     dff_pad, resident, compute_dtype, vmem_limit):
    m = x2d.shape[0]
    out_dtype = jnp.dtype(x2d.dtype)
    obytes = out_dtype.itemsize
    cbytes = jnp.dtype(compute_dtype).itemsize

    # Zero padding keeps the math exact: padded x cols / W1 rows contribute 0,
    # padded W1 cols + b1 entries give relu(0) = 0 so padded W2 rows are inert,
    # padded W2 cols / b2 entries produce output columns sliced off by caller.
    xp = jnp.pad(x2d.astype(compute_dtype), ((0, m_pad - m), (0, dim_p - dim)))
    n_row_tiles = m_pad // tm

    flops = 4 * m_pad * dim_p * dff_pad  # two matmuls, 2 flops / MAC
    weight_bytes = (w1p.size + w2p.size) * cbytes + (b1p.size + b2p.size) * 4

    if resident:
        cost = pl.CostEstimate(
            flops=flops, transcendentals=0,
            bytes_accessed=xp.size * cbytes + weight_bytes + m_pad * dim_p * obytes)
        return pl.pallas_call(
            _ffn_resident_kernel,
            out_shape=jax.ShapeDtypeStruct((m_pad, dim_p), out_dtype),
            grid_spec=pltpu.PrefetchScalarGridSpec(
                num_scalar_prefetch=0,
                grid=(n_row_tiles,),
                in_specs=[
                    pl.BlockSpec((tm, dim_p), lambda i: (i, 0)),      # x rows
                    pl.BlockSpec((dim_p, dff_pad), lambda i: (0, 0)),  # W1 (resident)
                    pl.BlockSpec((1, dff_pad), lambda i: (0, 0)),      # b1
                    pl.BlockSpec((dff_pad, dim_p), lambda i: (0, 0)),  # W2 (resident)
                    pl.BlockSpec((1, dim_p), lambda i: (0, 0)),        # b2
                ],
                out_specs=pl.BlockSpec((tm, dim_p), lambda i: (i, 0)),
            ),
            compiler_params=pltpu.CompilerParams(
                dimension_semantics=("parallel",),
                vmem_limit_bytes=vmem_limit),
            cost_estimate=cost,
        )(xp, w1p, b1p, w2p, b2p)

    # Streaming path: weights re-read once per row tile (reflected in the cost).
    cost = pl.CostEstimate(
        flops=flops, transcendentals=0,
        bytes_accessed=(xp.size * cbytes + n_row_tiles * weight_bytes
                        + m_pad * dim_p * obytes))
    f32_out = out_dtype == jnp.dtype(jnp.float32)
    kernel = _ffn_stream_kernel_f32out if f32_out else _ffn_stream_kernel_acc
    scratch = [] if f32_out else [pltpu.VMEM((tm, dim_p), jnp.float32)]
    return pl.pallas_call(
        kernel,
        out_shape=jax.ShapeDtypeStruct((m_pad, dim_p), out_dtype),
        grid_spec=pltpu.PrefetchScalarGridSpec(
            num_scalar_prefetch=0,
            grid=(n_row_tiles, dff_pad // tf),
            in_specs=[
                pl.BlockSpec((tm, dim_p), lambda i, k: (i, 0)),   # x rows
                pl.BlockSpec((dim_p, tf), lambda i, k: (0, k)),   # W1 slab
                pl.BlockSpec((1, tf), lambda i, k: (0, k)),       # b1 slab
                pl.BlockSpec((tf, dim_p), lambda i, k: (k, 0)),   # W2 slab
                pl.BlockSpec((1, dim_p), lambda i, k: (0, 0)),    # b2
            ],
            out_specs=pl.BlockSpec((tm, dim_p), lambda i, k: (i, 0)),
            scratch_shapes=scratch,
        ),
        compiler_params=pltpu.CompilerParams(
            dimension_semantics=("parallel", "arbitrary"),
            vmem_limit_bytes=vmem_limit),
        cost_estimate=cost,
    )(xp, w1p, b1p, w2p, b2p)


# --------------------------------------------------------------------------- #
# Module-like wrapper: pads/casts weights ONCE, plans tiles per generation.
# --------------------------------------------------------------------------- #
class FeedForwardPallas:
    """linear_1 -> relu -> dropout(eval, identity) -> linear_2.

    Weights are (in_features, out_features), i.e. transposed vs. nn.Linear.
    """

    def __init__(self, w1, b1, w2, b2, *, compute_dtype=jnp.bfloat16,
                 tm=None, tf=512, force_streaming=False):
        dim, d_ff = w1.shape
        assert w2.shape == (d_ff, dim) and b1.shape == (d_ff,) and b2.shape == (dim,)
        self.dim, self.d_ff = dim, d_ff
        self.cd = jnp.dtype(compute_dtype)
        cbytes = self.cd.itemsize
        obytes = 4  # plan conservatively for f32 outputs

        self.vmem_cap = _vmem_budget_bytes()
        # Generation-aware row tile: 128 MiB chips (v5e/v6e) need tm ~1024 to be
        # MXU-bound vs. the weight stream; v7x (64 MiB, 3.2 TB/s) needs ~512.
        if tm is None:
            tm = 1024 if self.vmem_cap >= (90 << 20) else 512
        self.tm = max(16, _round_up(tm, 16))

        self.dim_p = _round_up(dim, 128)

        # Resident-weights fast path check (m-independent, conservative 2x buffers
        # for the weights plus the f32 h intermediate and its cast copy).
        dff_res = _round_up(d_ff, 128)
        resident_est = (
            2 * 2 * self.dim_p * dff_res * cbytes      # W1 + W2
            + 2 * (dff_res + self.dim_p) * 4           # biases (f32)
            + 2 * self.tm * self.dim_p * cbytes        # x tiles
            + 2 * self.tm * self.dim_p * obytes        # out tiles
            + self.tm * dff_res * (4 + cbytes))        # h (f32) + cast copy
        self.resident = (not force_streaming) and (
            resident_est + (4 << 20) <= self.vmem_cap)

        if self.resident:
            self.tf = dff_res
            self.dff_pad = dff_res
        else:
            # d_ff tiles in multiples of 256 (full 256x256 MXU fill on v6e/v7x);
            # auto-shrink tf then tm until the working set fits the budget.
            tf_eff = min(_round_up(tf, 256), _round_up(d_ff, 256))
            while True:
                if self._stream_est(self.tm, tf_eff, cbytes, obytes) + (4 << 20) \
                        <= self.vmem_cap:
                    break
                if tf_eff > 256:
                    tf_eff = max(256, _round_up(tf_eff // 2, 256))
                elif self.tm > 128:
                    self.tm = max(128, _round_up(self.tm // 2, 16))
                else:
                    break
            self.tf = tf_eff
            self.dff_pad = _round_up(d_ff, tf_eff)

        # Pad / cast weights ONCE (hoisted out of the per-call hot path).
        self.w1p = jnp.pad(jnp.asarray(w1, self.cd),
                           ((0, self.dim_p - dim), (0, self.dff_pad - d_ff)))
        self.w2p = jnp.pad(jnp.asarray(w2, self.cd),
                           ((0, self.dff_pad - d_ff), (0, self.dim_p - dim)))
        self.b1p = jnp.pad(jnp.asarray(b1, jnp.float32),
                           ((0, self.dff_pad - d_ff),)).reshape(1, self.dff_pad)
        self.b2p = jnp.pad(jnp.asarray(b2, jnp.float32),
                           ((0, self.dim_p - dim),)).reshape(1, self.dim_p)

    def _stream_est(self, tm, tf, cbytes, obytes):
        dim_p = self.dim_p
        return (2 * tm * dim_p * cbytes          # x tile (double-buffered)
                + 2 * dim_p * tf * cbytes        # W1 slab
                + 2 * tf * dim_p * cbytes        # W2 slab
                + 2 * (tf + dim_p) * 4           # biases
                + 2 * tm * dim_p * obytes        # out tile
                + tm * dim_p * 4                 # acc scratch (worst case)
                + tm * tf * (4 + cbytes))        # h (f32) + cast copy

    def __call__(self, x):
        batch, seq, dim = x.shape
        assert dim == self.dim
        m = batch * seq
        cbytes = self.cd.itemsize
        obytes = jnp.dtype(x.dtype).itemsize

        tm_eff = min(self.tm, _round_up(m, 16))
        m_pad = _round_up(m, tm_eff)
        # v7x megacore: the "parallel" row axis is the only shardable one; make
        # sure there are >= 2 row tiles when there are enough rows to split.
        if m_pad // tm_eff == 1 and m_pad >= 32:
            tm_eff = _round_up(m_pad // 2, 16)
            m_pad = _round_up(m, tm_eff)

        if self.resident:
            est = (2 * 2 * self.dim_p * self.dff_pad * cbytes
                   + 2 * (self.dff_pad + self.dim_p) * 4
                   + 2 * tm_eff * self.dim_p * cbytes
                   + 2 * tm_eff * self.dim_p * obytes
                   + tm_eff * self.dff_pad * (4 + cbytes))
        else:
            est = self._stream_est(tm_eff, self.tf, cbytes, obytes)
        vmem_limit = int(min(max(est + (4 << 20), 16 << 20), self.vmem_cap))

        out2d = _ffn_padded_call(
            x.reshape(m, dim), self.w1p, self.b1p, self.w2p, self.b2p,
            tm=tm_eff, tf=self.tf, m_pad=m_pad, dim=dim, dim_p=self.dim_p,
            dff_pad=self.dff_pad, resident=self.resident,
            compute_dtype=self.cd, vmem_limit=vmem_limit)
        return out2d[:m, :dim].reshape(batch, seq, dim)


def init_params(key, dim, d_ff, dtype=jnp.float32):
    """Deterministic init mimicking nn.Linear's U(-1/sqrt(fan_in), 1/sqrt(fan_in))."""
    k1, k2, k3, k4 = jax.random.split(key, 4)
    bound1 = 1.0 / (dim ** 0.5)
    bound2 = 1.0 / (d_ff ** 0.5)
    w1 = jax.random.uniform(k1, (dim, d_ff), dtype, -bound1, bound1)
    b1 = jax.random.uniform(k2, (d_ff,), dtype, -bound1, bound1)
    w2 = jax.random.uniform(k3, (d_ff, dim), dtype, -bound2, bound2)
    b2 = jax.random.uniform(k4, (dim,), dtype, -bound2, bound2)
    return w1, b1, w2, b2


if __name__ == "__main__":
    key = jax.random.PRNGKey(0)
    kx, kp = jax.random.split(key)

    batch, seq, dim, d_ff = 2, 8, 32, 64
    x = jax.random.normal(kx, (batch, seq, dim), jnp.float32)
    w1, b1, w2, b2 = init_params(kp, dim, d_ff)

    ref = (jnp.maximum(x.reshape(-1, dim) @ w1 + b1, 0.0) @ w2 + b2)
    ref = ref.reshape(batch, seq, dim)

    # 1) Exact f32 compute path (resident weights) — tight tolerance.
    ffn_f32 = FeedForwardPallas(w1, b1, w2, b2, compute_dtype=jnp.float32)
    out = jax.block_until_ready(ffn_f32(x))
    assert out.shape == (batch, seq, dim)
    assert jnp.allclose(out, ref, atol=1e-5, rtol=1e-5)

    # 2) Default path: bf16 MXU compute, f32 accumulation — loose tolerance.
    ffn = FeedForwardPallas(w1, b1, w2, b2)
    out_bf16 = jax.block_until_ready(ffn(x))
    assert jnp.allclose(out_bf16, ref, atol=1e-1, rtol=1e-1)

    # 3) Streaming path, f32 output (direct output accumulation, no scratch).
    ffn_stream = FeedForwardPallas(w1, b1, w2, b2, compute_dtype=jnp.float32,
                                   force_streaming=True)
    out_s = jax.block_until_ready(ffn_stream(x))
    assert jnp.allclose(out_s, ref, atol=1e-5, rtol=1e-5)

    # 4) Streaming path, bf16 input/output (f32 VMEM accumulator kernel).
    ffn_stream_bf = FeedForwardPallas(w1, b1, w2, b2, force_streaming=True)
    out_sb = jax.block_until_ready(ffn_stream_bf(x.astype(jnp.bfloat16)))
    assert jnp.allclose(out_sb.astype(jnp.float32), ref, atol=1e-1, rtol=1e-1)

    print("KERNEL_OK")
</pallas_src>

<mosaic_0001>
module attributes {stable_mosaic.version = 11 : i64} {
  func.func @_ffn_resident_kernel(%arg0: i32, %arg1: memref<16x128xf32, #tpu.memory_space<vmem>>, %arg2: memref<128x128xf32, #tpu.memory_space<vmem>>, %arg3: memref<1x128xf32, #tpu.memory_space<vmem>>, %arg4: memref<128x128xf32, #tpu.memory_space<vmem>>, %arg5: memref<1x128xf32, #tpu.memory_space<vmem>>, %arg6: memref<16x128xf32, #tpu.memory_space<vmem>>) attributes {dimension_semantics = [#tpu.dimension_semantics<parallel>], iteration_bounds = array<i64: 1>, scalar_prefetch = 0 : i64, scratch_operands = 0 : i64, tpu.core_type = #tpu.core_type<tc>, window_params = [{transform_indices = @transform_0, window_bounds = array<i64: 16, 128>}, {pipeline_mode = #tpu.pipeline_mode<synchronous>, transform_indices = @transform_1, window_bounds = array<i64: 128, 128>}, {pipeline_mode = #tpu.pipeline_mode<synchronous>, transform_indices = @transform_2, window_bounds = array<i64: 1, 128>}, {pipeline_mode = #tpu.pipeline_mode<synchronous>, transform_indices = @transform_3, window_bounds = array<i64: 128, 128>}, {pipeline_mode = #tpu.pipeline_mode<synchronous>, transform_indices = @transform_4, window_bounds = array<i64: 1, 128>}, {transform_indices = @transform_5, window_bounds = array<i64: 16, 128>}]} {
    %c0 = arith.constant 0 : index
    %c0_0 = arith.constant 0 : index
    %0 = vector.load %arg1[%c0, %c0_0] : memref<16x128xf32, #tpu.memory_space<vmem>>, vector<16x128xf32>
    %c0_1 = arith.constant 0 : index
    %c0_2 = arith.constant 0 : index
    %1 = vector.load %arg2[%c0_1, %c0_2] : memref<128x128xf32, #tpu.memory_space<vmem>>, vector<128x128xf32>
    %cst = arith.constant dense<0.000000e+00> : vector<16x128xf32>
    %2 = tpu.matmul %0, %1, %cst {dimension_numbers = #tpu.dot_dimension_numbers<[1], [0], [0], [1], [0, 0, 1, 1], [], []>} : vector<16x128xf32>, vector<128x128xf32>, vector<16x128xf32> -> vector<16x128xf32>
    %c0_3 = arith.constant 0 : index
    %c0_4 = arith.constant 0 : index
    %3 = vector.load %arg3[%c0_3, %c0_4] : memref<1x128xf32, #tpu.memory_space<vmem>>, vector<1x128xf32>
    %4 = vector.broadcast %3 : vector<1x128xf32> to vector<16x128xf32>
    %5 = arith.addf %2, %4 : vector<16x128xf32>
    %cst_5 = arith.constant 0.000000e+00 : f32
    %6 = vector.broadcast %cst_5 : f32 to vector<16x128xf32>
    %7 = arith.maximumf %5, %6 : vector<16x128xf32>
    %c0_6 = arith.constant 0 : index
    %c0_7 = arith.constant 0 : index
    %8 = vector.load %arg4[%c0_6, %c0_7] : memref<128x128xf32, #tpu.memory_space<vmem>>, vector<128x128xf32>
    %cst_8 = arith.constant dense<0.000000e+00> : vector<16x128xf32>
    %9 = tpu.matmul %7, %8, %cst_8 {dimension_numbers = #tpu.dot_dimension_numbers<[1], [0], [0], [1], [0, 0, 1, 1], [], []>} : vector<16x128xf32>, vector<128x128xf32>, vector<16x128xf32> -> vector<16x128xf32>
    %c0_9 = arith.constant 0 : index
    %c0_10 = arith.constant 0 : index
    %10 = vector.load %arg5[%c0_9, %c0_10] : memref<1x128xf32, #tpu.memory_space<vmem>>, vector<1x128xf32>
    %11 = vector.broadcast %10 : vector<1x128xf32> to vector<16x128xf32>
    %12 = arith.addf %9, %11 : vector<16x128xf32>
    %c0_11 = arith.constant 0 : index
    %c0_12 = arith.constant 0 : index
    %13 = vector.load %arg6[%c0_11, %c0_12] : memref<16x128xf32, #tpu.memory_space<vmem>>, vector<16x128xf32>
    tpu.vector_store %arg6[%c0_11, %c0_12], %12 {strides = array<i32>} : memref<16x128xf32, #tpu.memory_space<vmem>>, vector<16x128xf32>,
    return
  }
  func.func @transform_0(%arg0: i32) -> (i32, i32) {
    %c0_i32 = arith.constant 0 : i32
    %c0_i32_0 = arith.constant 0 : i32
    return %arg0, %c0_i32 : i32, i32
  }
  func.func @transform_1(%arg0: i32) -> (i32, i32) {
    %c0_i32 = arith.constant 0 : i32
    %c0_i32_0 = arith.constant 0 : i32
    %c0_i32_1 = arith.constant 0 : i32
    return %c0_i32, %c0_i32_0 : i32, i32
  }
  func.func @transform_2(%arg0: i32) -> (i32, i32) {
    %c0_i32 = arith.constant 0 : i32
    %c0_i32_0 = arith.constant 0 : i32
    %c0_i32_1 = arith.constant 0 : i32
    return %c0_i32, %c0_i32_0 : i32, i32
  }
  func.func @transform_3(%arg0: i32) -> (i32, i32) {
    %c0_i32 = arith.constant 0 : i32
    %c0_i32_0 = arith.constant 0 : i32
    %c0_i32_1 = arith.constant 0 : i32
    return %c0_i32, %c0_i32_0 : i32, i32
  }
  func.func @transform_4(%arg0: i32) -> (i32, i32) {
    %c0_i32 = arith.constant 0 : i32
    %c0_i32_0 = arith.constant 0 : i32
    %c0_i32_1 = arith.constant 0 : i32
    return %c0_i32, %c0_i32_0 : i32, i32
  }
  func.func @transform_5(%arg0: i32) -> (i32, i32) {
    %c0_i32 = arith.constant 0 : i32
    %c0_i32_0 = arith.constant 0 : i32
    return %arg0, %c0_i32 : i32, i32
  }
}

</mosaic_0001>

<llo_original>
// kernel: _ffn_padded_call.1
$region0: #{_ffn_padded_call.1}
  #allocation0 [shape = 'u32[]', space=smem, size = 0x4, offset = 0x4, fixed_abs, tag = 'smem constant byte address 0x4 - core index']
  #allocation1 [shape = 'u32[72,128]{1,0:T(1,128)}', space=vmem, size = 0x9000, scoped, tag = 'internal scratch']
  %s0 = inlined_call_operand.vmem [shape: f32[16,128], index: 0, kind: input, shape index: {}]
  %s1 = inlined_call_operand.hbm [shape: f32[128,128], index: 1, kind: input, shape index: {}]
  %s2 = inlined_call_operand.vmem [shape: f32[1,128], index: 2, kind: input, shape index: {}]
  %s3 = inlined_call_operand.hbm [shape: f32[128,128], index: 3, kind: input, shape index: {}]
  %s4 = inlined_call_operand.vmem [shape: f32[1,128], index: 4, kind: input, shape index: {}]
  %s5 = inlined_call_operand.hbm [shape: f32[16,128], index: 5, kind: output, shape index: {}]
  %s6 = sld [smem:[#allocation0]]
  $region38: #{_ffn_padded_call.1} parent=0
    _
  %s8 = ssub.s32 1, %s6
  %s9 = scalar_select 0, %s8, %s6
  $region1: #{_ffn_padded_call.1} parent=0
    #allocation2 [shape = 'u8[65536]{0}', space=vmem, size = 0x10000, scoped, tag = 'input window, operand 1, single buffered']
    #allocation3 [shape = 's32[1]{0}', space=sflag, size = 0x4, scoped, tag = 'scoped memory for _ffn_padded_call.1']
    #allocation4 [shape = 's32[1]{0}', space=sflag, size = 0x4, scoped, tag = 'scoped memory for _ffn_padded_call.1']
    #allocation5 [shape = 'u8[65536]{0}', space=vmem, size = 0x10000, scoped, tag = 'input window, operand 3, single buffered']
    #allocation6 [shape = 's32[1]{0}', space=sflag, size = 0x4, scoped, tag = 'scoped memory for _ffn_padded_call.1']
    #allocation7 [shape = 'u8[8192]{0}', space=vmem, size = 0x2000, scoped, tag = 'output window, operand 0, single buffered']
    %10 = vsyncpa [#allocation3], 0
    %11 = vsyncpa [#allocation6], 0
    %12 = vsyncpa [#allocation4], 0
    // Predicated region
    $region2: #{_ffn_padded_call.1} parent=1 // pred_check
      _
    $region3: #{_ffn_padded_call.1} parent=1 // pred_check_branch
      %14 = sbr.rel (0) target = $region5
    $region4: #{_ffn_padded_call.1} parent=1 // pred_region
      _
    $region5: #{_ffn_padded_call.1} parent=1 // pred_fallthru
      _
    // Predicated region
    $region6: #{_ffn_padded_call.1} parent=1 // pred_check
      _
    $region7: #{_ffn_padded_call.1} parent=1 // pred_check_branch
      %16 = sbr.rel (0) target = $region9
    $region8: #{_ffn_padded_call.1} parent=1 // pred_region
      %18 = vsyncadd [#allocation3], 0
      %s19 = sshll.u32 %s1, 4
      %s20 = int_to_ptr.hbm [resolvable:$true] %s19
      %s21 = sshll.u32 [#allocation2], 4
      %s22 = int_to_ptr.vmem [resolvable:$true] %s21
      %27 = dma.hbm_to_vmem [thread:$0]  %s20, 2048, %s22, [#allocation3], 128, 128, 8
    $region9: #{_ffn_padded_call.1} parent=1 // pred_fallthru
      _
    // Predicated region
    $region10: #{_ffn_padded_call.1} parent=1 // pred_check
      _
    $region11: #{_ffn_padded_call.1} parent=1 // pred_check_branch
      %29 = sbr.rel (0) target = $region13
    $region12: #{_ffn_padded_call.1} parent=1 // pred_region
      _
    $region13: #{_ffn_padded_call.1} parent=1 // pred_fallthru
      _
    // Predicated region
    $region14: #{_ffn_padded_call.1} parent=1 // pred_check
      _
    $region15: #{_ffn_padded_call.1} parent=1 // pred_check_branch
      %31 = sbr.rel (0) target = $region17
    $region16: #{_ffn_padded_call.1} parent=1 // pred_region
      %33 = vsyncadd [#allocation6], 0
      %s34 = sshll.u32 %s3, 4
      %s35 = int_to_ptr.hbm [resolvable:$true] %s34
      %s36 = sshll.u32 [#allocation5], 4
      %s37 = int_to_ptr.vmem [resolvable:$true] %s36
      %42 = dma.hbm_to_vmem [thread:$0]  %s35, 2048, %s37, [#allocation6], 128, 128, 8
    $region17: #{_ffn_padded_call.1} parent=1 // pred_fallthru
      _
    // Predicated region
    $region18: #{_ffn_padded_call.1} parent=1 // pred_check
      _
    $region19: #{_ffn_padded_call.1} parent=1 // pred_check_branch
      %44 = sbr.rel (0) target = $region21
    $region20: #{_ffn_padded_call.1} parent=1 // pred_region
      _
    $region21: #{_ffn_padded_call.1} parent=1 // pred_fallthru
      _
    // Predicated region
    $region22: #{_ffn_padded_call.1} parent=1 // pred_check
      _
    $region23: #{_ffn_padded_call.1} parent=1 // pred_check_branch
      %46 = sbr.rel (0) target = $region25
    $region24: #{_ffn_padded_call.1} parent=1 // pred_region
      %48 = dma.done [#allocation3], 2048
    $region25: #{_ffn_padded_call.1} parent=1 // pred_fallthru
      _
    // Predicated region
    $region26: #{_ffn_padded_call.1} parent=1 // pred_check
      _
    $region27: #{_ffn_padded_call.1} parent=1 // pred_check_branch
      %50 = sbr.rel (0) target = $region29
    $region28: #{_ffn_padded_call.1} parent=1 // pred_region
      %52 = dma.done [#allocation6], 2048
    $region29: #{_ffn_padded_call.1} parent=1 // pred_fallthru
      _
    %v53 = vld [vmem:[%s0] sm:$0xff]
    %v54 = vld [vmem:[%s0 + $0x8] sm:$0xff]
    %v55 = vld [vmem:[#allocation2] sm:$0xff]
    %v56 = vld [vmem:[#allocation2 + $0x8] sm:$0xff]
    %v57 = vld [vmem:[#allocation2 + $0x10] sm:$0xff]
    %v58 = vld [vmem:[#allocation2 + $0x18] sm:$0xff]
    %v59 = vld [vmem:[#allocation2 + $0x20] sm:$0xff]
    %v60 = vld [vmem:[#allocation2 + $0x28] sm:$0xff]
    %v61 = vld [vmem:[#allocation2 + $0x30] sm:$0xff]
    %v62 = vld [vmem:[#allocation2 + $0x38] sm:$0xff]
    %v63 = vld [vmem:[#allocation2 + $0x40] sm:$0xff]
    %v64 = vld [vmem:[#allocation2 + $0x48] sm:$0xff]
    %v65 = vld [vmem:[#allocation2 + $0x50] sm:$0xff]
    %v66 = vld [vmem:[#allocation2 + $0x58] sm:$0xff]
    %v67 = vld [vmem:[#allocation2 + $0x60] sm:$0xff]
    %v68 = vld [vmem:[#allocation2 + $0x68] sm:$0xff]
    %v69 = vld [vmem:[#allocation2 + $0x70] sm:$0xff]
    %v70 = vld [vmem:[#allocation2 + $0x78] sm:$0xff]
    %v71 = vld [vmem:[%s2] sm:$0x1]
    %v73 = vperm.slane %v71, 0
    %75 = vmatpush.msra.mxu0 %v70
    %76 = vmatpush.msra.mxu0 %v69
    %77 = vmatpush.msra.mxu0 %v68
    %78 = vmatpush.msra.mxu0 %v67
    %79 = vmatpush.msra.mxu0 %v66
    %80 = vmatpush.msra.mxu0 %v65
    %81 = vmatpush.msra.mxu0 %v64
    %82 = vmatpush.msra.mxu0 %v63
    %83 = vmatpush.msra.mxu0 %v62
    %84 = vmatpush.msra.mxu0 %v61
    %85 = vmatpush.msra.mxu0 %v60
    %86 = vmatpush.msra.mxu0 %v59
    %87 = vmatpush.msra.mxu0 %v58
    %88 = vmatpush.msra.mxu0 %v57
    %89 = vmatpush.msra.mxu0 %v56
    %90 = vmatpush.msra.mxu0 %v55
    %91 = vmatmul.f32.gmra.mxu0 %v53
    %v92 = vpop.f32.mrf.mxu0
    %v93 = vadd.f32 %v73, %v92
    %94 = vmatmul.f32.gmra.mxu0 %v54
    %v95 = vpop.f32.mrf.mxu0
    %v96 = vadd.f32 %v73, %v95
    %97 = vdwg.mxu0
    %v98 = vmax.f32 %v93, 0.0
    %v99 = vmax.f32 %v96, 0.0
    %v100 = vld [vmem:[#allocation5] sm:$0xff]
    %v101 = vld [vmem:[#allocation5 + $0x8] sm:$0xff]
    %v102 = vld [vmem:[#allocation5 + $0x10] sm:$0xff]
    %v103 = vld [vmem:[#allocation5 + $0x18] sm:$0xff]
    %v104 = vld [vmem:[#allocation5 + $0x20] sm:$0xff]
    %v105 = vld [vmem:[#allocation5 + $0x28] sm:$0xff]
    %v106 = vld [vmem:[#allocation5 + $0x30] sm:$0xff]
    %v107 = vld [vmem:[#allocation5 + $0x38] sm:$0xff]
    %v108 = vld [vmem:[#allocation5 + $0x40] sm:$0xff]
    %v109 = vld [vmem:[#allocation5 + $0x48] sm:$0xff]
    %v110 = vld [vmem:[#allocation5 + $0x50] sm:$0xff]
    %v111 = vld [vmem:[#allocation5 + $0x58] sm:$0xff]
    %v112 = vld [vmem:[#allocation5 + $0x60] sm:$0xff]
    %v113 = vld [vmem:[#allocation5 + $0x68] sm:$0xff]
    %v114 = vld [vmem:[#allocation5 + $0x70] sm:$0xff]
    %v115 = vld [vmem:[#allocation5 + $0x78] sm:$0xff]
    %v116 = vld [vmem:[%s4] sm:$0x1]
    %v118 = vperm.slane %v116, 0
    %120 = vmatpush.msra.mxu0 %v115
    %121 = vmatpush.msra.mxu0 %v114
    %122 = vmatpush.msra.mxu0 %v113
    %123 = vmatpush.msra.mxu0 %v112
    %124 = vmatpush.msra.mxu0 %v111
    %125 = vmatpush.msra.mxu0 %v110
    %126 = vmatpush.msra.mxu0 %v109
    %127 = vmatpush.msra.mxu0 %v108
    %128 = vmatpush.msra.mxu0 %v107
    %129 = vmatpush.msra.mxu0 %v106
    %130 = vmatpush.msra.mxu0 %v105
    %131 = vmatpush.msra.mxu0 %v104
    %132 = vmatpush.msra.mxu0 %v103
    %133 = vmatpush.msra.mxu0 %v102
    %134 = vmatpush.msra.mxu0 %v101
    %135 = vmatpush.msra.mxu0 %v100
    %136 = vmatmul.f32.gmra.mxu0 %v98
    %v137 = vpop.f32.mrf.mxu0
    %v138 = vadd.f32 %v118, %v137
    %139 = vmatmul.f32.gmra.mxu0 %v99
    %v140 = vpop.f32.mrf.mxu0
    %v141 = vadd.f32 %v118, %v140
    %142 = vdwg.mxu0
    %143 = vst [vmem:[#allocation7] sm:$0xff] %v138
    %144 = vst [vmem:[#allocation7 + $0x8] sm:$0xff] %v141
    // Predicated region
    $region30: #{_ffn_padded_call.1} parent=1 // pred_check
      _
    $region31: #{_ffn_padded_call.1} parent=1 // pred_check_branch
      %146 = sbr.rel (0) target = $region33
    $region32: #{_ffn_padded_call.1} parent=1 // pred_region
      %148 = vsyncadd [#allocation4], 0
      %s149 = sshll.u32 [#allocation7], 4
      %s150 = int_to_ptr.vmem [resolvable:$true] %s149
      %s151 = sshll.u32 %s5, 4
      %s152 = int_to_ptr.hbm [resolvable:$true] %s151
      %157 = dma.vmem_to_hbm [thread:$0]  %s150, 256, %s152, [#allocation4], 128, 128, 8
    $region33: #{_ffn_padded_call.1} parent=1 // pred_fallthru
      _
    // Predicated region
    $region34: #{_ffn_padded_call.1} parent=1 // pred_check
      _
    $region35: #{_ffn_padded_call.1} parent=1 // pred_check_branch
      %159 = sbr.rel (0) target = $region37
    $region36: #{_ffn_padded_call.1} parent=1 // pred_region
      %161 = dma.done [#allocation4], 256
    $region37: #{_ffn_padded_call.1} parent=1 // pred_fallthru
      _
    %162 = vsyncpa [#allocation3], 1
    %163 = vsyncpa [#allocation6], 1
    %164 = vsyncpa [#allocation4], 1

</llo_original>
